<compile_context>
chip_gen: v7x
topology: tpu7x:2x2x1
jax: 0.10.0
libtpu: 0.0.40
codegen_flags: <defaults>
</compile_context>

<pallas_src>
import functools

import jax
import jax.numpy as jnp
from jax.experimental import pallas as pl
from jax.experimental.pallas import tpu as pltpu


def _round_up(a: int, b: int) -> int:
    return ((a + b - 1) // b) * b


def _cdiv(a: int, b: int) -> int:
    return -(-a // b)


def _addpool_kernel(batch_ref, x_ref, out_ref, acc_ref, *, tg):
    """One grid step of the tiled scatter-sum.

    batch_ref: (num_k, tn) int32 — resident graph-id rows (-1 = padding)
    x_ref:     (tn, td)   float  — node-feature tile for N step k, D tile j
    out_ref:   (tg, td)   float  — pooled tile (written on last reduction step)
    acc_ref:   (tg, td)   f32    — VMEM accumulator, persistent across N axis
    """
    k = pl.program_id(2)

    @pl.when(k == 0)
    def _init():
        acc_ref[...] = jnp.zeros_like(acc_ref)

    # Graph ids handled by this output tile start at g0. Shift the (1, tn) id
    # row into tile-local coordinates (cheap) instead of materializing a
    # (tg, tn) absolute iota (expensive + spill-heavy).
    g0 = pl.program_id(0) * tg
    ids = batch_ref[pl.ds(k, 1), :] - g0                      # (1, tn) int32
    g_local = jax.lax.broadcasted_iota(jnp.int32, (tg, 1), 0)  # (tg, 1)
    # One-hot in x's native dtype (0/1 exact in bf16; keeps the bf16 MXU path
    # and halves vreg/VMEM pressure vs. a forced f32 upcast).
    onehot = (g_local == ids).astype(x_ref.dtype)              # (tg, tn)
    acc_ref[...] += jnp.dot(onehot, x_ref[...],
                            preferred_element_type=jnp.float32)

    @pl.when(k == pl.num_programs(2) - 1)
    def _finalize():
        out_ref[...] = acc_ref[...].astype(out_ref.dtype)


def add_pooling(x, batch, num_graphs, *, td_max=1024, tn_max=1024):
    """Pallas AddPooling forward (eval mode).

    Args:
      x:          (N, D) node features
      batch:      (N,) int graph id per node (values in [0, num_graphs))
      num_graphs: static number of graphs G
    Returns:
      (G, D) pooled graph features (same dtype as x)
    """
    n, d = x.shape
    itemsize = jnp.dtype(x.dtype).itemsize
    # Sublane packing multiple for the output-G tile dimension.
    sub = {4: 8, 2: 16, 1: 32}.get(itemsize, 8)

    # Per-chip VMEM capacity (v5e/v6e: 128 MiB, v7x: 64 MiB); conservative
    # fallback if the query is unavailable. Use half as the tiling budget to
    # leave headroom for compiler scratch / neighboring fusions.
    try:
        vmem_cap = int(pltpu.get_tpu_info().vmem_capacity_bytes)
    except Exception:  # pragma: no cover - e.g. non-TPU tracing environments
        vmem_cap = 64 * 1024 * 1024
    vmem_budget = vmem_cap // 2

    # Lane-dense (multiple-of-128) tiles on N (reduction) and D.
    tn = min(tn_max, _round_up(n, 128))
    td = min(td_max, _round_up(d, 128))
    n_p = _round_up(n, tn)
    d_p = _round_up(d, td)

    def tg_fit(td_, tn_, n_p_):
        """Largest sub-aligned tg whose footprint fits the VMEM budget."""
        fixed = 2 * tn_ * td_ * itemsize + 2 * n_p_ * 4       # x dbuf + id row
        per_row = td_ * (2 * itemsize + 4)                     # out dbuf + f32 acc
        avail = vmem_budget - fixed
        return 0 if avail <= 0 else (avail // per_row // sub) * sub

    # Shrink D/N tiles only if they alone blow the budget (doesn't trigger at
    # the 1024 defaults on any current generation).
    while tg_fit(td, tn, n_p) < sub and (td > 128 or tn > 128):
        if tn >= td and tn > 128:
            tn //= 2
        else:
            td //= 2
        n_p = _round_up(n, tn)
        d_p = _round_up(d, td)
    fit = max(tg_fit(td, tn, n_p), sub)

    # Choose tg: prefer a single output tile (avoids re-streaming x from HBM —
    # the x BlockSpec ignores the G axis, so every extra G tile re-reads all of
    # x). Otherwise use balanced tiles that minimize padded G.
    g_req = _round_up(max(num_graphs, 1), sub)
    if g_req <= fit:
        tg = g_req
    else:
        ng = _cdiv(num_graphs, fit)
        tg = _round_up(_cdiv(num_graphs, ng), sub)
        while tg > fit:
            ng += 1
            tg = _round_up(_cdiv(num_graphs, ng), sub)
    g_p = _round_up(num_graphs, tg)
    g_tiles = g_p // tg

    # If both G and D are single tiles, split D into two lane-aligned halves
    # (x HBM traffic unchanged) so v7x's second TensorCore has a parallel axis
    # to shard; only when it adds no padding.
    if g_tiles == 1 and d_p // td == 1 and d_p >= 256 and (d_p // 128) % 2 == 0:
        td = d_p // 2

    num_k = n_p // tn
    grid = (g_p // tg, d_p // td, num_k)

    # Pad: zero features for extra nodes, batch id -1 so they match no graph.
    x_p = jnp.pad(x, ((0, n_p - n), (0, d_p - d)))
    batch_p = jnp.pad(batch.astype(jnp.int32), (0, n_p - n),
                      constant_values=-1).reshape(num_k, tn)

    # Need-based scoped-VMEM limit (double-buffered inputs/outputs + resident
    # id rows + f32 accumulator), ~1.5x headroom, capped at physical VMEM.
    bytes_need = (2 * tn * td * itemsize      # x double-buffer
                  + 2 * n_p * 4               # resident batch-id rows
                  + 2 * tg * td * itemsize    # output double-buffer
                  + tg * td * 4)              # f32 accumulator scratch
    vmem_limit = int(min(vmem_cap, max(int(1.5 * bytes_need), 4 * 1024 * 1024)))

    cost = pl.CostEstimate(
        flops=2 * g_p * n_p * d_p,
        transcendentals=0,
        # x (and its padding) is re-read once per G tile; ids read once;
        # pooled output written once.
        bytes_accessed=(g_tiles * n_p * d_p * itemsize
                        + n_p * 4
                        + g_p * d_p * itemsize),
    )

    kernel = functools.partial(_addpool_kernel, tg=tg)
    pooled = pl.pallas_call(
        kernel,
        out_shape=jax.ShapeDtypeStruct((g_p, d_p), x.dtype),
        grid=grid,
        in_specs=[
            # Resident graph-id rows: constant block index => DMA'd once.
            pl.BlockSpec((num_k, tn), lambda i, j, k: (0, 0)),
            # Node features: (tn, td) block indexed by (N step, D tile).
            pl.BlockSpec((tn, td), lambda i, j, k: (k, j)),
        ],
        # Output tile stays resident across the whole N (reduction) axis.
        out_specs=pl.BlockSpec((tg, td), lambda i, j, k: (i, j)),
        scratch_shapes=[pltpu.VMEM((tg, td), jnp.float32)],
        compiler_params=pltpu.CompilerParams(
            dimension_semantics=("parallel", "parallel", "arbitrary"),
            vmem_limit_bytes=vmem_limit,
        ),
        cost_estimate=cost,
    )(batch_p, x_p)

    # Strip padding; nn.Dropout in eval mode == identity.
    return pooled[:num_graphs, :d]


if __name__ == "__main__":
    key = jax.random.PRNGKey(0)
    k_x, k_b = jax.random.split(key)

    N, D, G = 16, 32, 4  # 16 nodes, 32-dim features, 4 graphs
    x = jax.random.normal(k_x, (N, D), dtype=jnp.float32)
    batch = jax.random.randint(k_b, (N,), 0, G, dtype=jnp.int32)

    out = add_pooling(x, batch, num_graphs=G)
    out = jax.block_until_ready(out)

    # Pure-JAX reference (scatter_sum == segment_sum along dim 0).
    ref = jax.ops.segment_sum(x, batch, num_segments=G)
    assert out.shape == (G, D)
    assert jnp.allclose(out, ref, atol=1e-5, rtol=1e-5), "mismatch vs reference"

    print("KERNEL_OK")
</pallas_src>

<mosaic_0001>
module attributes {stable_mosaic.version = 11 : i64} {
  func.func @_addpool_kernel(%arg0: i32, %arg1: i32, %arg2: i32, %arg3: memref<1x128xi32, #tpu.memory_space<vmem>>, %arg4: memref<128x128xf32, #tpu.memory_space<vmem>>, %arg5: memref<8x128xf32, #tpu.memory_space<vmem>>, %arg6: memref<8x128xf32, #tpu.memory_space<vmem>>) attributes {dimension_semantics = [#tpu.dimension_semantics<parallel>, #tpu.dimension_semantics<parallel>, #tpu.dimension_semantics<arbitrary>], iteration_bounds = array<i64: 1, 1, 1>, scalar_prefetch = 0 : i64, scratch_operands = 1 : i64, tpu.core_type = #tpu.core_type<tc>, window_params = [{pipeline_mode = #tpu.pipeline_mode<synchronous>, transform_indices = @transform_0, window_bounds = array<i64: 1, 128>}, {transform_indices = @transform_1, window_bounds = array<i64: 128, 128>}, {transform_indices = @transform_2, window_bounds = array<i64: 8, 128>}]} {
    %c0_i32 = arith.constant 0 : i32
    %0 = arith.cmpi eq, %arg2, %c0_i32 : i32
    %1 = arith.extui %0 : i1 to i32
    %c0_i32_0 = arith.constant 0 : i32
    %2 = arith.cmpi ne, %1, %c0_i32_0 : i32
    scf.if %2 {
      %cst_9 = arith.constant 0.000000e+00 : f32
      %22 = vector.broadcast %cst_9 : f32 to vector<8x128xf32>
      %c0_10 = arith.constant 0 : index
      %c0_11 = arith.constant 0 : index
      %23 = vector.load %arg6[%c0_10, %c0_11] : memref<8x128xf32, #tpu.memory_space<vmem>>, vector<8x128xf32>
      tpu.vector_store %arg6[%c0_10, %c0_11], %22 {strides = array<i32>} : memref<8x128xf32, #tpu.memory_space<vmem>>, vector<8x128xf32>,
    } else {
    }
    %c8_i32 = arith.constant 8 : i32
    %3 = arith.muli %arg0, %c8_i32 : i32
    %4 = arith.index_cast %arg2 : i32 to index
    %c0 = arith.constant 0 : index
    %5 = vector.load %arg3[%4, %c0] : memref<1x128xi32, #tpu.memory_space<vmem>>, vector<1x128xi32>
    %6 = vector.broadcast %3 : i32 to vector<1x128xi32>
    %7 = arith.subi %5, %6 : vector<1x128xi32>
    %8 = tpu.iota {dimensions = array<i32: 0>} : vector<8x1xi32>
    %9 = vector.broadcast %8 : vector<8x1xi32> to vector<8x128xi32>
    %10 = vector.broadcast %7 : vector<1x128xi32> to vector<8x128xi32>
    %11 = arith.cmpi eq, %9, %10 : vector<8x128xi32>
    %12 = arith.extui %11 : vector<8x128xi1> to vector<8x128xi32>
    %13 = arith.sitofp %12 : vector<8x128xi32> to vector<8x128xf32>
    %c0_1 = arith.constant 0 : index
    %c0_2 = arith.constant 0 : index
    %14 = vector.load %arg6[%c0_1, %c0_2] : memref<8x128xf32, #tpu.memory_space<vmem>>, vector<8x128xf32>
    %c0_3 = arith.constant 0 : index
    %c0_4 = arith.constant 0 : index
    %15 = vector.load %arg4[%c0_3, %c0_4] : memref<128x128xf32, #tpu.memory_space<vmem>>, vector<128x128xf32>
    %cst = arith.constant dense<0.000000e+00> : vector<8x128xf32>
    %16 = tpu.matmul %13, %15, %cst {dimension_numbers = #tpu.dot_dimension_numbers<[1], [0], [0], [1], [0, 0, 1, 1], [], []>} : vector<8x128xf32>, vector<128x128xf32>, vector<8x128xf32> -> vector<8x128xf32>
    %17 = arith.addf %14, %16 : vector<8x128xf32>
    %c0_5 = arith.constant 0 : index
    %c0_6 = arith.constant 0 : index
    %18 = vector.load %arg6[%c0_5, %c0_6] : memref<8x128xf32, #tpu.memory_space<vmem>>, vector<8x128xf32>
    tpu.vector_store %arg6[%c0_5, %c0_6], %17 {strides = array<i32>} : memref<8x128xf32, #tpu.memory_space<vmem>>, vector<8x128xf32>,
    %c0_i32_7 = arith.constant 0 : i32
    %19 = arith.cmpi eq, %arg2, %c0_i32_7 : i32
    %20 = arith.extui %19 : i1 to i32
    %c0_i32_8 = arith.constant 0 : i32
    %21 = arith.cmpi ne, %20, %c0_i32_8 : i32
    scf.if %21 {
      %c0_9 = arith.constant 0 : index
      %c0_10 = arith.constant 0 : index
      %22 = vector.load %arg6[%c0_9, %c0_10] : memref<8x128xf32, #tpu.memory_space<vmem>>, vector<8x128xf32>
      %c0_11 = arith.constant 0 : index
      %c0_12 = arith.constant 0 : index
      %23 = vector.load %arg5[%c0_11, %c0_12] : memref<8x128xf32, #tpu.memory_space<vmem>>, vector<8x128xf32>
      tpu.vector_store %arg5[%c0_11, %c0_12], %22 {strides = array<i32>} : memref<8x128xf32, #tpu.memory_space<vmem>>, vector<8x128xf32>,
    } else {
    }
    return
  }
  func.func @transform_0(%arg0: i32, %arg1: i32, %arg2: i32) -> (i32, i32) {
    %c0_i32 = arith.constant 0 : i32
    %c0_i32_0 = arith.constant 0 : i32
    %c0_i32_1 = arith.constant 0 : i32
    return %c0_i32, %c0_i32_0 : i32, i32
  }
  func.func @transform_1(%arg0: i32, %arg1: i32, %arg2: i32) -> (i32, i32) {
    %c0_i32 = arith.constant 0 : i32
    return %arg2, %arg1 : i32, i32
  }
  func.func @transform_2(%arg0: i32, %arg1: i32, %arg2: i32) -> (i32, i32) {
    %c0_i32 = arith.constant 0 : i32
    return %arg0, %arg1 : i32, i32
  }
}

</mosaic_0001>

<llo_original>
// kernel: tpu_custom_call.1
$region0: #{tpu_custom_call.1}
  #allocation0 [shape = 'u32[]', space=smem, size = 0x4, offset = 0x4, fixed_abs, tag = 'smem constant byte address 0x4 - core index']
  #allocation1 [shape = 'u32[144,128]{1,0:T(1,128)}', space=vmem, size = 0x12000, scoped, tag = 'internal scratch']
  #allocation2 [shape = 'f32[8,128]{1,0:T(8,128)}', space=vmem, size = 0x1000, scoped, tag = 'scratch operand']
  %s0 = inlined_call_operand.hbm [shape: s32[1,128], index: 0, kind: input, shape index: {}]
  %s1 = inlined_call_operand.hbm [shape: f32[128,128], index: 1, kind: input, shape index: {}]
  %s2 = inlined_call_operand.hbm [shape: f32[8,128], index: 2, kind: output, shape index: {}]
  %s3 = sld [smem:[#allocation0]]
  $region34: #{tpu_custom_call.1} parent=0
    _
  %s5 = ssub.s32 1, %s3
  %s6 = scalar_select 0, %s5, %s3
  $region1: #{tpu_custom_call.1} parent=0
    #allocation3 [shape = 'u8[512]{0}', space=vmem, size = 0x400, scoped, tag = 'input window, operand 0, single buffered']
    #allocation4 [shape = 's32[1]{0}', space=sflag, size = 0x4, scoped, tag = 'scoped memory for tpu_custom_call.1']
    #allocation5 [shape = 's32[1]{0}', space=sflag, size = 0x4, scoped, tag = 'scoped memory for tpu_custom_call.1']
    #allocation6 [shape = 'u8[65536]{0}', space=vmem, size = 0x10000, scoped, tag = 'input window, operand 1, single buffered']
    #allocation7 [shape = 's32[1]{0}', space=sflag, size = 0x4, scoped, tag = 'scoped memory for tpu_custom_call.1']
    #allocation8 [shape = 'u8[4096]{0}', space=vmem, size = 0x1000, scoped, tag = 'output window, operand 0, single buffered']
    %7 = vsyncpa [#allocation4], 0
    %8 = vsyncpa [#allocation7], 0
    %9 = vsyncpa [#allocation5], 0
    // Predicated region
    $region2: #{tpu_custom_call.1} parent=1 // pred_check
      _
    $region3: #{tpu_custom_call.1} parent=1 // pred_check_branch
      %11 = sbr.rel (0) target = $region5
    $region4: #{tpu_custom_call.1} parent=1 // pred_region
      %s13 = ssub.s32 16, 16
      %14 = vsyncadd [#allocation4], %s13
      %s16 = sshll.u32 [#allocation3], 4
      %s17 = int_to_ptr.vmem [resolvable:$true] %s16
      %19 = dma.hbm_to_vmem [thread:$0]  %s0, 16, %s17, [#allocation4]
    $region5: #{tpu_custom_call.1} parent=1 // pred_fallthru
      _
    // Predicated region
    $region6: #{tpu_custom_call.1} parent=1 // pred_check
      _
    $region7: #{tpu_custom_call.1} parent=1 // pred_check_branch
      %21 = sbr.rel (0) target = $region9
    $region8: #{tpu_custom_call.1} parent=1 // pred_region
      %s23 = ssub.s32 2048, 2048
      %24 = vsyncadd [#allocation7], %s23
      %s25 = sshll.u32 [#allocation6], 4
      %s26 = int_to_ptr.vmem [resolvable:$true] %s25
      %31 = dma.hbm_to_vmem [thread:$0]  %s1, 2048, %s26, [#allocation7], 128, 128, 8
    $region9: #{tpu_custom_call.1} parent=1 // pred_fallthru
      _
    // Predicated region
    $region10: #{tpu_custom_call.1} parent=1 // pred_check
      _
    $region11: #{tpu_custom_call.1} parent=1 // pred_check_branch
      %33 = sbr.rel (0) target = $region13
    $region12: #{tpu_custom_call.1} parent=1 // pred_region
      %34 = dma.done [#allocation4], 16
    $region13: #{tpu_custom_call.1} parent=1 // pred_fallthru
      _
    // Predicated region
    $region14: #{tpu_custom_call.1} parent=1 // pred_check
      _
    $region15: #{tpu_custom_call.1} parent=1 // pred_check_branch
      %36 = sbr.rel (0) target = $region17
    $region16: #{tpu_custom_call.1} parent=1 // pred_region
      %37 = dma.done [#allocation7], 2048
    $region17: #{tpu_custom_call.1} parent=1 // pred_fallthru
      _
    %p38 = scmp.eq.s32.totalorder 0, 0
    // Predicated region
    $region18: #{tpu_custom_call.1} parent=1 // pred_check
      %p39 = pneg %p38
    $region19: #{tpu_custom_call.1} parent=1 // pred_check_branch
      %41 = sbr.rel (%p39) target = $region21
    $region20: #{tpu_custom_call.1} parent=1 // pred_region
      %42 = vst [vmem:[#allocation2] sm:$0xff] 0.0
    $region21: #{tpu_custom_call.1} parent=1 // pred_fallthru
      _
    %s43 = smul.u32 0, 8
    %v44 = vld [vmem:[#allocation3] sm:$0x1]
    %v45 = vstv %s43
    %v46 = vsub.s32 %v44, %v45
    %v47 = vlaneseq
    %v48 = vshrl.u32 %v47, 7
    %v49 = vlaneseq
    %v50 = vshrl.u32 %v49, 7
    %v51 = vsub.s32 0, %v50
    %v52 = vrot.slane %v46, %v51
    %vm53 = vcmp.eq.s32.totalorder %v48, %v52
    %v54 = vsel %vm53, 1, 0
    %v55 = vcvt.s32.f32 %v54
    %v56 = vld [vmem:[#allocation2] sm:$0xff]
    %v57 = vld [vmem:[#allocation6] sm:$0xff]
    %v58 = vld [vmem:[#allocation6 + $0x8] sm:$0xff]
    %v59 = vld [vmem:[#allocation6 + $0x10] sm:$0xff]
    %v60 = vld [vmem:[#allocation6 + $0x18] sm:$0xff]
    %v61 = vld [vmem:[#allocation6 + $0x20] sm:$0xff]
    %v62 = vld [vmem:[#allocation6 + $0x28] sm:$0xff]
    %v63 = vld [vmem:[#allocation6 + $0x30] sm:$0xff]
    %v64 = vld [vmem:[#allocation6 + $0x38] sm:$0xff]
    %v65 = vld [vmem:[#allocation6 + $0x40] sm:$0xff]
    %v66 = vld [vmem:[#allocation6 + $0x48] sm:$0xff]
    %v67 = vld [vmem:[#allocation6 + $0x50] sm:$0xff]
    %v68 = vld [vmem:[#allocation6 + $0x58] sm:$0xff]
    %v69 = vld [vmem:[#allocation6 + $0x60] sm:$0xff]
    %v70 = vld [vmem:[#allocation6 + $0x68] sm:$0xff]
    %v71 = vld [vmem:[#allocation6 + $0x70] sm:$0xff]
    %v72 = vld [vmem:[#allocation6 + $0x78] sm:$0xff]
    %73 = vmatprep.subr.mxu0 0.0
    %74 = vmatpush1.msra.mxu0 %v57
    %75 = vmatprep.subr.mxu0 0.0
    %76 = vmatpush1.msra.mxu0 %v58
    %77 = vmatprep.subr.mxu0 0.0
    %78 = vmatpush1.msra.mxu0 %v59
    %79 = vmatprep.subr.mxu0 0.0
    %80 = vmatpush1.msra.mxu0 %v60
    %81 = vmatprep.subr.mxu0 0.0
    %82 = vmatpush1.msra.mxu0 %v61
    %83 = vmatprep.subr.mxu0 0.0
    %84 = vmatpush1.msra.mxu0 %v62
    %85 = vmatprep.subr.mxu0 0.0
    %86 = vmatpush1.msra.mxu0 %v63
    %87 = vmatprep.subr.mxu0 0.0
    %88 = vmatpush1.msra.mxu0 %v64
    %89 = vmatprep.subr.mxu0 0.0
    %90 = vmatpush1.msra.mxu0 %v65
    %91 = vmatprep.subr.mxu0 0.0
    %92 = vmatpush1.msra.mxu0 %v66
    %93 = vmatprep.subr.mxu0 0.0
    %94 = vmatpush1.msra.mxu0 %v67
    %95 = vmatprep.subr.mxu0 0.0
    %96 = vmatpush1.msra.mxu0 %v68
    %97 = vmatprep.subr.mxu0 0.0
    %98 = vmatpush1.msra.mxu0 %v69
    %99 = vmatprep.subr.mxu0 0.0
    %100 = vmatpush1.msra.mxu0 %v70
    %101 = vmatprep.subr.mxu0 0.0
    %102 = vmatpush1.msra.mxu0 %v71
    %103 = vmatprep.subr.mxu0 0.0
    %104 = vmatpush1.msra.mxu0 %v72
    %105 = vmatprep.subr.mxu0 0.0
    %106 = vmatpush1.msra.mxu0 0.0
    %107 = vmatprep.subr.mxu0 0.0
    %108 = vmatpush1.msra.mxu0 0.0
    %109 = vmatprep.subr.mxu0 0.0
    %110 = vmatpush1.msra.mxu0 0.0
    %111 = vmatprep.subr.mxu0 0.0
    %112 = vmatpush1.msra.mxu0 0.0
    %113 = vmatprep.subr.mxu0 0.0
    %114 = vmatpush1.msra.mxu0 0.0
    %115 = vmatprep.subr.mxu0 0.0
    %116 = vmatpush1.msra.mxu0 0.0
    %117 = vmatprep.subr.mxu0 0.0
    %118 = vmatpush1.msra.mxu0 0.0
    %119 = vmatprep.subr.mxu0 0.0
    %120 = vmatpush1.msra.mxu0 0.0
    %121 = vmatprep.subr.mxu0 0.0
    %122 = vmatpush1.msra.mxu0 0.0
    %123 = vmatprep.subr.mxu0 0.0
    %124 = vmatpush1.msra.mxu0 0.0
    %125 = vmatprep.subr.mxu0 0.0
    %126 = vmatpush1.msra.mxu0 0.0
    %127 = vmatprep.subr.mxu0 0.0
    %128 = vmatpush1.msra.mxu0 0.0
    %129 = vmatprep.subr.mxu0 0.0
    %130 = vmatpush1.msra.mxu0 0.0
    %131 = vmatprep.subr.mxu0 0.0
    %132 = vmatpush1.msra.mxu0 0.0
    %133 = vmatprep.subr.mxu0 0.0
    %134 = vmatpush1.msra.mxu0 0.0
    %135 = vmatprep.subr.mxu0 0.0
    %136 = vmatpush1.msra.mxu0 0.0
    %137 = vmatprep.mubr.f32.mxu0 0.0
    %138 = vmatmul.mubr.f32.gmra.mrb[0].mxu0 %v55
    %v139 = vpop.f32.mrb[0].mxu0
    %v140 = vadd.f32 0.0, %v139
    %v141 = vpop.f32.mrb[0].mxu0
    %142 = vdwg.mxu0
    %v143 = vadd.f32 %v56, %v140
    %144 = vst [vmem:[#allocation2] sm:$0xff] %v143
    // Predicated region
    $region22: #{tpu_custom_call.1} parent=1 // pred_check
      %p145 = pneg %p38
    $region23: #{tpu_custom_call.1} parent=1 // pred_check_branch
      %147 = sbr.rel (%p145) target = $region25
    $region24: #{tpu_custom_call.1} parent=1 // pred_region
      %v148 = vld [vmem:[#allocation2] sm:$0xff]
      %149 = vst [vmem:[#allocation8] sm:$0xff] %v148
    $region25: #{tpu_custom_call.1} parent=1 // pred_fallthru
      _
    // Predicated region
    $region26: #{tpu_custom_call.1} parent=1 // pred_check
      _
    $region27: #{tpu_custom_call.1} parent=1 // pred_check_branch
      %151 = sbr.rel (0) target = $region29
    $region28: #{tpu_custom_call.1} parent=1 // pred_region
      %s153 = ssub.s32 128, 128
      %154 = vsyncadd [#allocation5], %s153
      %s156 = sshll.u32 [#allocation8], 4
      %s157 = int_to_ptr.vmem [resolvable:$true] %s156
      %159 = dma.vmem_to_hbm [thread:$0]  %s157, 128, %s2, [#allocation5]
    $region29: #{tpu_custom_call.1} parent=1 // pred_fallthru
      _
    // Predicated region
    $region30: #{tpu_custom_call.1} parent=1 // pred_check
      _
    $region31: #{tpu_custom_call.1} parent=1 // pred_check_branch
      %161 = sbr.rel (0) target = $region33
    $region32: #{tpu_custom_call.1} parent=1 // pred_region
      %162 = dma.done [#allocation5], 128
    $region33: #{tpu_custom_call.1} parent=1 // pred_fallthru
      _
    %163 = vsyncpa [#allocation4], 1
    %164 = vsyncpa [#allocation7], 1
    %165 = vsyncpa [#allocation5], 1

</llo_original>
